<compile_context>
chip_gen: v7x
topology: tpu7x:2x2x1
jax: 0.10.0
libtpu: 0.0.40
codegen_flags: <defaults>
</compile_context>

<pallas_src>
import math

import jax
import jax.numpy as jnp
from jax import lax
from jax.experimental import pallas as pl
from jax.experimental.pallas import tpu as pltpu

_EPS = 1e-5


def _biasfree_layernorm_kernel(x_ref, w_ref, o_ref):
    x = x_ref[...].astype(jnp.float32)                  # (TR, C)
    w = w_ref[...].astype(jnp.float32)                  # (1, C), broadcast over rows

    mean = jnp.mean(x, axis=-1, keepdims=True)          # (TR, 1)
    d = x - mean
    var = jnp.mean(d * d, axis=-1, keepdims=True)       # biased var (ddof=0), matches torch
    inv = lax.rsqrt(var + _EPS)

    # BiasFree: normalize the *unshifted* x (no mean subtraction in the output).
    o_ref[...] = (x * inv * w).astype(o_ref.dtype)


def _sublane_multiple(dtype):
    """Row-tile alignment so sub-32-bit dtypes stay packed (f32->8, bf16->16, i8/fp8->32)."""
    itemsize = jnp.dtype(dtype).itemsize
    return max(8, 32 // max(itemsize, 1))


def _round_up(n, m):
    return ((n + m - 1) // m) * m


def _pick_block_rows(R, C, dtype, target_f32_tile_bytes):
    """Row tile: ~target bytes of f32 working set, dtype-aligned, >=2 grid steps if possible."""
    mult = _sublane_multiple(dtype)
    row_bytes_f32 = C * 4
    br = max(mult, (target_f32_tile_bytes // row_bytes_f32) // mult * mult)
    # Never request a block taller than the (rounded-up) array itself.
    br = min(br, _round_up(R, mult))
    # v7x megacore: make sure the "parallel" grid axis has >= 2 steps when R allows it.
    if pl.cdiv(R, br) < 2 and R > mult:
        br = _round_up(pl.cdiv(R, 2), mult)
    return br


def biasfree_layernorm(x, weight, *, target_tile_bytes=2 * 1024 * 1024):
    """x: (..., C), weight: (C,) -> same shape/dtype as x."""
    orig_shape = x.shape
    C = orig_shape[-1]
    R = int(math.prod(orig_shape[:-1]))

    x2 = x.reshape(R, C)
    w2 = weight.reshape(1, C)

    br = _pick_block_rows(R, C, x.dtype, target_tile_bytes)
    grid = (pl.cdiv(R, br),)

    out = pl.pallas_call(
        _biasfree_layernorm_kernel,
        out_shape=jax.ShapeDtypeStruct((R, C), x.dtype),
        grid_spec=pltpu.PrefetchScalarGridSpec(
            num_scalar_prefetch=0,
            grid=grid,
            in_specs=[
                pl.BlockSpec((br, C), lambda i: (i, 0)),   # row tile, full (lane-dense) last dim
                pl.BlockSpec((1, C), lambda i: (0, 0)),    # weight, resident every step
            ],
            out_specs=pl.BlockSpec((br, C), lambda i: (i, 0)),
        ),
        compiler_params=pltpu.CompilerParams(
            dimension_semantics=("parallel",),
            vmem_limit_bytes=32 * 1024 * 1024,
        ),
    )(x2, w2)

    return out.reshape(orig_shape)


def _reference(x, w):
    var = jnp.var(x, axis=-1, keepdims=True)   # biased (ddof=0), same as torch unbiased=False
    return x / jnp.sqrt(var + _EPS) * w


if __name__ == "__main__":
    key = jax.random.PRNGKey(0)
    kx, kw = jax.random.split(key)

    # Small Restormer-style LayerNorm input: (batch, tokens, channels).
    # R = 2*60 = 120 rows -> exercises the >=2-step grid split AND the ragged last tile.
    B, T, C = 2, 60, 48
    x = jax.random.normal(kx, (B, T, C), jnp.float32)
    weight = 1.0 + 0.1 * jax.random.normal(kw, (C,), jnp.float32)

    out = jax.jit(biasfree_layernorm)(x, weight)
    out = jax.block_until_ready(out)
    assert out.shape == (B, T, C), out.shape

    ref = _reference(x, weight)
    err = float(jnp.max(jnp.abs(out - ref)))
    assert jnp.allclose(out, ref, atol=1e-5, rtol=1e-5), err

    print("KERNEL_OK")
</pallas_src>

<mosaic_0001>
module attributes {stable_mosaic.version = 11 : i64} {
  func.func @_biasfree_layernorm_kernel(%arg0: i32, %arg1: memref<64x48xf32, #tpu.memory_space<vmem>>, %arg2: memref<1x48xf32, #tpu.memory_space<vmem>>, %arg3: memref<64x48xf32, #tpu.memory_space<vmem>>) attributes {dimension_semantics = [#tpu.dimension_semantics<parallel>], iteration_bounds = array<i64: 2>, scalar_prefetch = 0 : i64, scratch_operands = 0 : i64, tpu.core_type = #tpu.core_type<tc>, window_params = [{transform_indices = @transform_0, window_bounds = array<i64: 64, 48>}, {pipeline_mode = #tpu.pipeline_mode<synchronous>, transform_indices = @transform_1, window_bounds = array<i64: 1, 48>}, {transform_indices = @transform_2, window_bounds = array<i64: 64, 48>}]} {
    %c0 = arith.constant 0 : index
    %c0_0 = arith.constant 0 : index
    %0 = vector.load %arg1[%c0, %c0_0] : memref<64x48xf32, #tpu.memory_space<vmem>>, vector<64x48xf32>
    %c0_1 = arith.constant 0 : index
    %c0_2 = arith.constant 0 : index
    %1 = vector.load %arg2[%c0_1, %c0_2] : memref<1x48xf32, #tpu.memory_space<vmem>>, vector<1x48xf32>
    %cst = arith.constant dense<0.000000e+00> : vector<64xf32>
    %2 = vector.multi_reduction <add>, %0, %cst [1] : vector<64x48xf32> to vector<64xf32>
    %3 = vector.shape_cast %2 : vector<64xf32> to vector<64x1xf32>
    %cst_3 = arith.constant 4.800000e+01 : f32
    %4 = vector.broadcast %cst_3 : f32 to vector<64x1xf32>
    %5 = arith.divf %3, %4 : vector<64x1xf32>
    %6 = vector.broadcast %5 : vector<64x1xf32> to vector<64x48xf32>
    %7 = arith.subf %0, %6 : vector<64x48xf32>
    %8 = arith.mulf %7, %7 : vector<64x48xf32>
    %cst_4 = arith.constant dense<0.000000e+00> : vector<64xf32>
    %9 = vector.multi_reduction <add>, %8, %cst_4 [1] : vector<64x48xf32> to vector<64xf32>
    %10 = vector.shape_cast %9 : vector<64xf32> to vector<64x1xf32>
    %cst_5 = arith.constant 4.800000e+01 : f32
    %11 = vector.broadcast %cst_5 : f32 to vector<64x1xf32>
    %12 = arith.divf %10, %11 : vector<64x1xf32>
    %cst_6 = arith.constant 9.99999974E-6 : f32
    %13 = vector.broadcast %cst_6 : f32 to vector<64x1xf32>
    %14 = arith.addf %12, %13 : vector<64x1xf32>
    %15 = math.rsqrt %14 : vector<64x1xf32>
    %16 = vector.broadcast %15 : vector<64x1xf32> to vector<64x48xf32>
    %17 = arith.mulf %0, %16 : vector<64x48xf32>
    %18 = vector.broadcast %1 : vector<1x48xf32> to vector<64x48xf32>
    %19 = arith.mulf %17, %18 : vector<64x48xf32>
    %c0_7 = arith.constant 0 : index
    %c0_8 = arith.constant 0 : index
    %20 = vector.load %arg3[%c0_7, %c0_8] : memref<64x48xf32, #tpu.memory_space<vmem>>, vector<64x48xf32>
    tpu.vector_store %arg3[%c0_7, %c0_8], %19 {strides = array<i32>} : memref<64x48xf32, #tpu.memory_space<vmem>>, vector<64x48xf32>,
    return
  }
  func.func @transform_0(%arg0: i32) -> (i32, i32) {
    %c0_i32 = arith.constant 0 : i32
    %c0_i32_0 = arith.constant 0 : i32
    return %arg0, %c0_i32 : i32, i32
  }
  func.func @transform_1(%arg0: i32) -> (i32, i32) {
    %c0_i32 = arith.constant 0 : i32
    %c0_i32_0 = arith.constant 0 : i32
    %c0_i32_1 = arith.constant 0 : i32
    return %c0_i32, %c0_i32_0 : i32, i32
  }
  func.func @transform_2(%arg0: i32) -> (i32, i32) {
    %c0_i32 = arith.constant 0 : i32
    %c0_i32_0 = arith.constant 0 : i32
    return %arg0, %c0_i32 : i32, i32
  }
}

</mosaic_0001>

<llo_original>
// kernel: biasfree_layernorm.1
$region0: #{biasfree_layernorm.1}
  #allocation0 [shape = 'u32[]', space=smem, size = 0x4, offset = 0x4, fixed_abs, tag = 'smem constant byte address 0x4 - core index']
  #allocation1 [shape = 'u32[144,128]{1,0:T(1,128)}', space=vmem, size = 0x12000, scoped, tag = 'internal scratch']
  %s0 = inlined_call_operand.vmem [shape: f32[120,48], index: 0, kind: input, shape index: {}]
  %s1 = inlined_call_operand.vmem [shape: f32[1,48], index: 1, kind: input, shape index: {}]
  %s2 = inlined_call_operand.vmem [shape: f32[120,48], index: 2, kind: output, shape index: {}]
  %s3 = sld [smem:[#allocation0]]
  $region89: #{biasfree_layernorm.1} parent=0
    _
  %s5 = ssub.s32 1, %s3
  %s6 = scalar_select 0, %s5, %s3
  $region1: #{biasfree_layernorm.1} parent=0
    #allocation2 [shape = 'u8[65536]{0}', space=vmem, size = 0x10000, scoped, tag = 'output window, operand 0']
    loop: start=0, step=1, limit=4
    $region2: #{biasfree_layernorm.1} parent=1 // loop_pre_header
      _
    $region3: #{biasfree_layernorm.1} parent=1 // loop_header
      %s8 = sphi 0, %s12
      %p9 = scmp.ge.s32.totalorder %s8, 4
      %s18 = sphi 0, %s20
      %s21 = sphi 0, %s18
      %s22 = sphi 0, %s21
      %s38 = sphi 0, %s22
      %s42 = sphi 0, %s42
      %s44 = sphi 0, %s42
      %s45 = sphi 0, %s44
      %s59 = sphi 0, %s45
      %s65 = sphi 0, %s67
      %s68 = sphi 0, %s65
      %s69 = sphi 0, %s68
      %s85 = sphi 0, %s69
    $region4: #{biasfree_layernorm.1} parent=1 // loop_header_branch
      %11 = sbr.rel (%p9) target = $region8
    $region5: #{biasfree_layernorm.1} parent=1 // loop_body
      %s13 = ssub.s32 %s8, 1
      %s14 = ssub.s32 %s8, 2
      %s15 = sadd.s32 %s8, 1
      %s16 = ssub.s32 %s8, %s15
      %p17 = scmp.eq.s32.totalorder %s16, 0
      %s19 = sadd.s32 %s18, 1
      %s20 = scalar_select %p17, %s18, %s19
      %p23 = pneg %p17
      %p24 = scmp.eq.s32.totalorder %s8, 1
      %p25 = por %p23, %p24
      %p26 = scmp.ne.s32.totalorder %s18, %s21
      %p27 = scmp.eq.s32.totalorder %s8, 0
      %p28 = por %p26, %p27
      %p29 = scmp.ne.s32.totalorder %s18, %s21
      %p30 = scmp.eq.s32.totalorder %s13, 1
      %p31 = por %p29, %p30
      %p32 = scmp.ne.s32.totalorder %s21, %s22
      %p33 = scmp.eq.s32.totalorder %s13, 0
      %p34 = por %p32, %p33
      %p35 = scmp.ne.s32.totalorder %s21, %s22
      %p36 = scmp.eq.s32.totalorder %s14, 1
      %p37 = por %p35, %p36
      %p39 = scmp.ne.s32.totalorder %s22, %s38
      %p40 = scmp.eq.s32.totalorder %s14, 0
      %p41 = por %p39, %p40
      %s43 = sadd.s32 %s42, 1
      %p46 = scmp.eq.s32.totalorder %s8, 1
      %p47 = scmp.ne.s32.totalorder %s42, %s44
      %p48 = scmp.eq.s32.totalorder %s8, 0
      %p49 = por %p47, %p48
      %p50 = scmp.ne.s32.totalorder %s42, %s44
      %p51 = scmp.eq.s32.totalorder %s13, 1
      %p52 = por %p50, %p51
      %p53 = scmp.ne.s32.totalorder %s44, %s45
      %p54 = scmp.eq.s32.totalorder %s13, 0
      %p55 = por %p53, %p54
      %p56 = scmp.ne.s32.totalorder %s44, %s45
      %p57 = scmp.eq.s32.totalorder %s14, 1
      %p58 = por %p56, %p57
      %p60 = scmp.ne.s32.totalorder %s45, %s59
      %p61 = scmp.eq.s32.totalorder %s14, 0
      %p62 = por %p60, %p61
      %s63 = ssub.s32 %s8, %s15
      %p64 = scmp.eq.s32.totalorder %s63, 0
      %s66 = sadd.s32 %s65, 1
      %s67 = scalar_select %p64, %s65, %s66
      %p70 = pneg %p64
      %p71 = scmp.eq.s32.totalorder %s8, 1
      %p72 = por %p70, %p71
      %p73 = scmp.ne.s32.totalorder %s65, %s68
      %p74 = scmp.eq.s32.totalorder %s8, 0
      %p75 = por %p73, %p74
      %p76 = scmp.ne.s32.totalorder %s65, %s68
      %p77 = scmp.eq.s32.totalorder %s13, 1
      %p78 = por %p76, %p77
      %p79 = scmp.ne.s32.totalorder %s68, %s69
      %p80 = scmp.eq.s32.totalorder %s13, 0
      %p81 = por %p79, %p80
      %p82 = scmp.ne.s32.totalorder %s68, %s69
      %p83 = scmp.eq.s32.totalorder %s14, 1
      %p84 = por %p82, %p83
      %p86 = scmp.ne.s32.totalorder %s69, %s85
      %p87 = scmp.eq.s32.totalorder %s14, 0
      %p88 = por %p86, %p87
      %p89 = scmp.le.s32.totalorder 1, %s8
      %p90 = scmp.lt.s32.totalorder %s8, 3
      %p91 = pnand %p89, %p90
      %p92 = pneg %p91
      // Predicated region
      $region9: #{biasfree_layernorm.1} parent=5 // pred_check
        _
      $region10: #{biasfree_layernorm.1} parent=5 // pred_check_branch
        %94 = sbr.rel (%p91) target = $region12
      $region11: #{biasfree_layernorm.1} parent=5 // pred_region
        %s95 = ssub.s32 %s8, 1
        // Predicated region
        $region13: #{biasfree_layernorm.1} parent=11 // pred_check
          %p96 = pneg %p55
        $region14: #{biasfree_layernorm.1} parent=11 // pred_check_branch
          %98 = sbr.rel (%p96) target = $region16
        $region15: #{biasfree_layernorm.1} parent=11 // pred_region
          _
        $region16: #{biasfree_layernorm.1} parent=11 // pred_fallthru
          _
      $region12: #{biasfree_layernorm.1} parent=5 // pred_fallthru
        _
      %p99 = scmp.lt.s32.totalorder %s8, 2
      // Predicated region
      $region17: #{biasfree_layernorm.1} parent=5 // pred_check
        %p100 = pneg %p99
      $region18: #{biasfree_layernorm.1} parent=5 // pred_check_branch
        %102 = sbr.rel (%p100) target = $region20
      $region19: #{biasfree_layernorm.1} parent=5 // pred_region
        // Predicated region
        $region21: #{biasfree_layernorm.1} parent=19 // pred_check
          %p103 = pneg %p28
        $region22: #{biasfree_layernorm.1} parent=19 // pred_check_branch
          %105 = sbr.rel (%p103) target = $region24
        $region23: #{biasfree_layernorm.1} parent=19 // pred_region
          %s106 = smul.u32 8, %s8
          %s107 = ssub.s32 15, %s106
          %p108 = scmp.lt.s32.totalorder %s107, 8
          %s109 = scalar_select %p108, %s107, 8
          %s110 = smul.u32 128, %s109
          %p111 = scmp.lt.s32.totalorder %s106, 14
          %s112 = scalar_select %p111, %s106, 14
          %s113 = smul.addr %s112, 8
          %s114 = scalar_lea.vmem %s0, %s113
          %s115 = smul.u32 8, %s8
          %s116 = ssub.s32 15, %s115
          %p117 = scmp.lt.s32.totalorder %s116, 8
          %s118 = scalar_select %p117, %s116, 8
          %s119 = smul.u32 128, %s118
        $region24: #{biasfree_layernorm.1} parent=19 // pred_fallthru
          _
      $region20: #{biasfree_layernorm.1} parent=5 // pred_fallthru
        _
      %p120 = scmp.le.s32.totalorder 1, %s8
      %p121 = scmp.lt.s32.totalorder %s8, 3
      %p122 = pnand %p120, %p121
      %p123 = pneg %p122
      // Predicated region
      $region25: #{biasfree_layernorm.1} parent=5 // pred_check
        _
      $region26: #{biasfree_layernorm.1} parent=5 // pred_check_branch
        %125 = sbr.rel (%p122) target = $region28
      $region27: #{biasfree_layernorm.1} parent=5 // pred_region
        %s126 = ssub.s32 %s8, 1
        %s127 = smul.u32 8, %s13
        %s128 = ssub.s32 15, %s127
        %p129 = scmp.lt.s32.totalorder %s128, 8
        %s130 = scalar_select %p129, %s128, 8
        %s131 = smul.u32 128, %s130
        %p132 = scmp.lt.s32.totalorder %s127, 14
        %s133 = scalar_select %p132, %s127, 14
        %s134 = smul.addr %s133, 8
        %s135 = scalar_lea.vmem %s0, %s134
        %p136 = pneg %p34
        %p137 = pneg %p31
        %p138 = pneg %p55
        %p139 = pneg %p52
        %p140 = pneg %p81
        %p141 = pneg %p78
        %s142 = sand.u32 %s68, 1
        %s143 = sand.u32 %s68, 1
        %s144 = smul.addr %s143, 64
        %s145 = scalar_lea.vmem [#allocation2], %s144
        %s146 = smul.u32 8, %s13
        %s147 = ssub.s32 15, %s146
        %p148 = scmp.lt.s32.totalorder %s147, 8
        %s149 = scalar_select %p148, %s147, 8
        %s150 = smul.u32 128, %s149
        %p151 = scmp.lt.s32.totalorder %s146, 14
        %s152 = scalar_select %p151, %s146, 14
        %s153 = smul.addr %s152, 8
        %s154 = scalar_lea.vmem %s0, %s153
        %s155 = smul.u32 8, %s13
        %s156 = ssub.s32 15, %s155
        %p157 = scmp.lt.s32.totalorder %s156, 8
        %s158 = scalar_select %p157, %s156, 8
        %s159 = smul.u32 128, %s158
        %s160 = smul.u32 8, %s13
        %s161 = ssub.s32 15, %s160
        %p162 = scmp.lt.s32.totalorder %s161, 8
        %s163 = scalar_select %p162, %s161, 8
        %s164 = smul.u32 128, %s163
        %v165 = vld [vmem:[%s154] sm:$0xff]
        %v166 = vld [vmem:[%s154 + $0x8] sm:$0xff]
        %v167 = vld [vmem:[%s154 + $0x10] sm:$0xff]
        %v168 = vld [vmem:[%s154 + $0x18] sm:$0xff]
        %v169 = vld [vmem:[%s154 + $0x20] sm:$0xff]
        %v170 = vld [vmem:[%s154 + $0x28] sm:$0xff]
        %v171 = vld [vmem:[%s154 + $0x30] sm:$0xff]
        %v172 = vld [vmem:[%s154 + $0x38] sm:$0xff]
        %v173 = vld [vmem:[%s1] sm:$0x1]
        %vm174 = vcmask 392192
        %v175 = vsel %vm174, %v165, 0.0
        %176 = vadd.xlane.f32.xlu0 %v175
        %v177 = vpop.xlane.xlu0 %176
        %v178 = vsel %vm174, %v166, 0.0
        %179 = vadd.xlane.f32.xlu0 %v178
        %v180 = vpop.xlane.xlu0 %179
        %v181 = vsel %vm174, %v167, 0.0
        %182 = vadd.xlane.f32.xlu0 %v181
        %v183 = vpop.xlane.xlu0 %182
        %v184 = vsel %vm174, %v168, 0.0
        %185 = vadd.xlane.f32.xlu0 %v184
        %v186 = vpop.xlane.xlu0 %185
        %v187 = vsel %vm174, %v169, 0.0
        %188 = vadd.xlane.f32.xlu0 %v187
        %v189 = vpop.xlane.xlu0 %188
        %v190 = vsel %vm174, %v170, 0.0
        %191 = vadd.xlane.f32.xlu0 %v190
        %v192 = vpop.xlane.xlu0 %191
        %v193 = vsel %vm174, %v171, 0.0
        %194 = vadd.xlane.f32.xlu0 %v193
        %v195 = vpop.xlane.xlu0 %194
        %v196 = vsel %vm174, %v172, 0.0
        %197 = vadd.xlane.f32.xlu0 %v196
        %v198 = vpop.xlane.xlu0 %197
        %v199 = vrcp.pop 48.0
        %v200 = vmul.f32 %v177, %v199
        %v201 = vmul.f32 %v180, %v199
        %v202 = vmul.f32 %v183, %v199
        %v203 = vmul.f32 %v186, %v199
        %v204 = vmul.f32 %v189, %v199
        %v205 = vmul.f32 %v192, %v199
        %v206 = vmul.f32 %v195, %v199
        %v207 = vmul.f32 %v198, %v199
        %v208 = vsub.f32 %v165, %v200
        %v209 = vsub.f32 %v166, %v201
        %v210 = vsub.f32 %v167, %v202
        %v211 = vsub.f32 %v168, %v203
        %v212 = vsub.f32 %v169, %v204
        %v213 = vsub.f32 %v170, %v205
        %v214 = vsub.f32 %v171, %v206
        %v215 = vsub.f32 %v172, %v207
        %v216 = vmul.f32 %v208, %v208
        %v217 = vmul.f32 %v209, %v209
        %v218 = vmul.f32 %v210, %v210
        %v219 = vmul.f32 %v211, %v211
        %v220 = vmul.f32 %v212, %v212
        %v221 = vmul.f32 %v213, %v213
        %v222 = vmul.f32 %v214, %v214
        %v223 = vmul.f32 %v215, %v215
        %v224 = vsel %vm174, %v216, 0.0
        %225 = vadd.xlane.f32.xlu0 %v224
        %v226 = vpop.xlane.xlu0 %225
        %v227 = vsel %vm174, %v217, 0.0
        %228 = vadd.xlane.f32.xlu0 %v227
        %v229 = vpop.xlane.xlu0 %228
        %v230 = vsel %vm174, %v218, 0.0
        %231 = vadd.xlane.f32.xlu0 %v230
        %v232 = vpop.xlane.xlu0 %231
        %v233 = vsel %vm174, %v219, 0.0
        %234 = vadd.xlane.f32.xlu0 %v233
        %v235 = vpop.xlane.xlu0 %234
        %v236 = vsel %vm174, %v220, 0.0
        %237 = vadd.xlane.f32.xlu0 %v236
        %v238 = vpop.xlane.xlu0 %237
        %v239 = vsel %vm174, %v221, 0.0
        %240 = vadd.xlane.f32.xlu0 %v239
        %v241 = vpop.xlane.xlu0 %240
        %v242 = vsel %vm174, %v222, 0.0
        %243 = vadd.xlane.f32.xlu0 %v242
        %v244 = vpop.xlane.xlu0 %243
        %v245 = vsel %vm174, %v223, 0.0
        %246 = vadd.xlane.f32.xlu0 %v245
        %v247 = vpop.xlane.xlu0 %246
        %v248 = vmul.f32 %v226, %v199
        %v249 = vmul.f32 %v229, %v199
        %v250 = vmul.f32 %v232, %v199
        %v251 = vmul.f32 %v235, %v199
        %v252 = vmul.f32 %v238, %v199
        %v253 = vmul.f32 %v241, %v199
        %v254 = vmul.f32 %v244, %v199
        %v255 = vmul.f32 %v247, %v199
        %v256 = vadd.f32 %v248, 1e-05
        %v257 = vadd.f32 %v249, 1e-05
        %v258 = vadd.f32 %v250, 1e-05
        %v259 = vadd.f32 %v251, 1e-05
        %v260 = vadd.f32 %v252, 1e-05
        %v261 = vadd.f32 %v253, 1e-05
        %v262 = vadd.f32 %v254, 1e-05
        %v263 = vadd.f32 %v255, 1e-05
        %v264 = vrsqrt.pop %v256
        %v265 = vrsqrt.pop %v257
        %v266 = vrsqrt.pop %v258
        %v267 = vrsqrt.pop %v259
        %v268 = vrsqrt.pop %v260
        %v269 = vrsqrt.pop %v261
        %v270 = vrsqrt.pop %v262
        %v271 = vrsqrt.pop %v263
        %v272 = vmul.f32 %v165, %v264
        %v273 = vmul.f32 %v166, %v265
        %v274 = vmul.f32 %v167, %v266
        %v275 = vmul.f32 %v168, %v267
        %v276 = vmul.f32 %v169, %v268
        %v277 = vmul.f32 %v170, %v269
        %v278 = vmul.f32 %v171, %v270
        %v279 = vmul.f32 %v172, %v271
        %v281 = vlaneseq
        %v282 = vshrl.u32 %v281, 7
        %v283 = vsub.s32 0, %v282
        %v284 = vrot.slane %v173, %v283
        %v286 = vmul.f32 %v272, %v284
        %v287 = vmul.f32 %v273, %v284
        %v288 = vmul.f32 %v274, %v284
        %v289 = vmul.f32 %v275, %v284
        %v290 = vmul.f32 %v276, %v284
        %v291 = vmul.f32 %v277, %v284
        %v292 = vmul.f32 %v278, %v284
        %v293 = vmul.f32 %v279, %v284
        %294 = vst.msk [vmem:[%s145] sm:$0xff] %vm174, %v286
        %295 = vst.msk [vmem:[%s145 + $0x8] sm:$0xff] %vm174, %v287
        %296 = vst.msk [vmem:[%s145 + $0x10] sm:$0xff] %vm174, %v288
        %297 = vst.msk [vmem:[%s145 + $0x18] sm:$0xff] %vm174, %v289
        %298 = vst.msk [vmem:[%s145 + $0x20] sm:$0xff] %vm174, %v290
        %299 = vst.msk [vmem:[%s145 + $0x28] sm:$0xff] %vm174, %v291
        %300 = vst.msk [vmem:[%s145 + $0x30] sm:$0xff] %vm174, %v292
        %301 = vst.msk [vmem:[%s145 + $0x38] sm:$0xff] %vm174, %v293
        %s302 = sand.u32 %s68, 1
        %s303 = sand.u32 %s68, 1
        %s304 = smul.addr %s303, 64
        %s305 = scalar_lea.vmem [#allocation2], %s304
        // Predicated region
        $region29: #{biasfree_layernorm.1} parent=27 // pred_check
          %p306 = pneg %p78
        $region30: #{biasfree_layernorm.1} parent=27 // pred_check_branch
          %308 = sbr.rel (%p306) target = $region32
        $region31: #{biasfree_layernorm.1} parent=27 // pred_region
          %s309 = smul.u32 8, %s13
          %s310 = ssub.s32 15, %s309
          %p311 = scmp.lt.s32.totalorder %s310, 8
          %s312 = scalar_select %p311, %s310, 8
          %s313 = smul.u32 128, %s312
          %p314 = scmp.ne.s32.totalorder 0, %s313
          %s315 = smul.addr %s309, 8
          %s316 = scalar_lea.vmem %s2, %s315
          // Predicated region
          $region33: #{biasfree_layernorm.1} parent=31 // pred_check
            %p317 = pneg %p314
          $region34: #{biasfree_layernorm.1} parent=31 // pred_check_branch
            %319 = sbr.rel (%p317) target = $region36
          $region35: #{biasfree_layernorm.1} parent=31 // pred_region
            // Predicated region
            $region37: #{biasfree_layernorm.1} parent=35 // pred_check
              _
            $region38: #{biasfree_layernorm.1} parent=35 // pred_check_branch
              %321 = sbr.rel (0) target = $region40
            $region39: #{biasfree_layernorm.1} parent=35 // pred_region
              // Predicated region
              $region59: #{biasfree_layernorm.1} parent=39 // pred_check
                _
              $region60: #{biasfree_layernorm.1} parent=39 // pred_check_branch
                %384 = sbr.rel (0) target = $region62
              $region61: #{biasfree_layernorm.1} parent=39 // pred_region
                %s385 = sshrl.u32 %s312, 3
                // While loop
                $region63: #{biasfree_layernorm.1} parent=61 // loop_pre_header
                  _
                $region64: #{biasfree_layernorm.1} parent=61 // loop_header
                  %s387 = sphi 0, %s389
                  %p388 = scmp.ge.s32.totalorder %s387, %s385
                  %s392 = sphi 0, %s413
                  %s393 = sphi %s305, %s416
                  %s394 = sphi %s316, %s417
                $region65: #{biasfree_layernorm.1} parent=61 // loop_header_branch
                  %391 = sbr.rel (%p388) target = $region69
                $region66: #{biasfree_layernorm.1} parent=61 // loop_body
                  %v395 = vld [vmem:[%s393] sm:$0xff]
                  %396 = vst [vmem:[%s394] sm:$0xff] %v395
                  %v397 = vld [vmem:[%s393 + $0x8] sm:$0xff]
                  %398 = vst [vmem:[%s394 + $0x8] sm:$0xff] %v397
                  %v399 = vld [vmem:[%s393 + $0x10] sm:$0xff]
                  %400 = vst [vmem:[%s394 + $0x10] sm:$0xff] %v399
                  %v401 = vld [vmem:[%s393 + $0x18] sm:$0xff]
                  %402 = vst [vmem:[%s394 + $0x18] sm:$0xff] %v401
                  %v403 = vld [vmem:[%s393 + $0x20] sm:$0xff]
                  %404 = vst [vmem:[%s394 + $0x20] sm:$0xff] %v403
                  %v405 = vld [vmem:[%s393 + $0x28] sm:$0xff]
                  %406 = vst [vmem:[%s394 + $0x28] sm:$0xff] %v405
                  %v407 = vld [vmem:[%s393 + $0x30] sm:$0xff]
                  %408 = vst [vmem:[%s394 + $0x30] sm:$0xff] %v407
                  %v409 = vld [vmem:[%s393 + $0x38] sm:$0xff]
                  %410 = vst [vmem:[%s394 + $0x38] sm:$0xff] %v409
                  %s411 = sadd.s32 1, %s392
                  %p412 = scmp.ge.s32.totalorder %s411, %s385
                  %s413 = scalar_select %p412, 0, %s411
                  %s414 = smul.u32 %s413, 64
                  %s415 = smul.u32 %s413, 64
                  %s416 = scalar_lea.vmem %s305, %s414 [#allocation2]
                  %s417 = scalar_lea.vmem %s316, %s415
                $region67: #{biasfree_layernorm.1} parent=61 // loop_footer
                  %s389 = sadd.s32 %s387, 1
                $region68: #{biasfree_layernorm.1} parent=61 // loop_footer_branch
                  %386 = sbr.rel target = $region64
                $region69: #{biasfree_layernorm.1} parent=61 // loop_exit
                  _
                %s418 = sshrl.u32 %s312, 3
                %s419 = sand.u32 %s312, 7
                %s420 = smul.u32 %s418, 8
                %s421 = smul.u32 8, %s420
                %s422 = scalar_lea.vmem %s305, %s421 [#allocation2]
                %s423 = smul.u32 8, %s420
                %s424 = scalar_lea.vmem %s316, %s423
                // While loop
                $region70: #{biasfree_layernorm.1} parent=61 // loop_pre_header
                  _
                $region71: #{biasfree_layernorm.1} parent=61 // loop_header
                  %s426 = sphi 0, %s428
                  %p427 = scmp.ge.s32.totalorder %s426, %s419
                  %s431 = sphi 0, %s438
                  %s432 = sphi %s422, %s441
                  %s433 = sphi %s424, %s442
                $region72: #{biasfree_layernorm.1} parent=61 // loop_header_branch
                  %430 = sbr.rel (%p427) target = $region76
                $region73: #{biasfree_layernorm.1} parent=61 // loop_body
                  %v434 = vld [vmem:[%s432] sm:$0xff]
                  %435 = vst [vmem:[%s433] sm:$0xff] %v434
                  %s436 = sadd.s32 1, %s431
                  %p437 = scmp.ge.s32.totalorder %s436, %s419
                  %s438 = scalar_select %p437, 0, %s436
                  %s439 = smul.u32 %s438, 8
                  %s440 = smul.u32 %s438, 8
                  %s441 = scalar_lea.vmem %s422, %s439 [#allocation2]
                  %s442 = scalar_lea.vmem %s424, %s440
                $region74: #{biasfree_layernorm.1} parent=61 // loop_footer
                  %s428 = sadd.s32 %s426, 1
                $region75: #{biasfree_layernorm.1} parent=61 // loop_footer_branch
                  %425 = sbr.rel target = $region71
                $region76: #{biasfree_layernorm.1} parent=61 // loop_exit
                  _
              $region62: #{biasfree_layernorm.1} parent=39 // pred_fallthru
                _
              // Predicated region
              $region77: #{biasfree_layernorm.1} parent=39 // pred_check
                _
              $region78: #{biasfree_layernorm.1} parent=39 // pred_check_branch
                %444 = sbr.rel target = $region80
              $region79: #{biasfree_layernorm.1} parent=39 // pred_region
                _
              $region80: #{biasfree_layernorm.1} parent=39 // pred_fallthru
                _
            $region40: #{biasfree_layernorm.1} parent=35 // pred_fallthru
              _
            // Predicated region
            $region41: #{biasfree_layernorm.1} parent=35 // pred_check
              _
            $region42: #{biasfree_layernorm.1} parent=35 // pred_check_branch
              %323 = sbr.rel target = $region44
            $region43: #{biasfree_layernorm.1} parent=35 // pred_region
              %s325 = sshrl.u32 %s312, 3
              // While loop
              $region45: #{biasfree_layernorm.1} parent=43 // loop_pre_header
                _
              $region46: #{biasfree_layernorm.1} parent=43 // loop_header
                %s327 = sphi 0, %s329
                %p328 = scmp.ge.s32.totalorder %s327, %s325
                %s332 = sphi 0, %s353
                %s333 = sphi %s305, %s356
                %s334 = sphi %s316, %s357
              $region47: #{biasfree_layernorm.1} parent=43 // loop_header_branch
                %331 = sbr.rel (%p328) target = $region51
              $region48: #{biasfree_layernorm.1} parent=43 // loop_body
                %v335 = vld [vmem:[%s333] sm:$0xff]
                %336 = vst [vmem:[%s334] sm:$0xff] %v335
                %v337 = vld [vmem:[%s333 + $0x8] sm:$0xff]
                %338 = vst [vmem:[%s334 + $0x8] sm:$0xff] %v337
                %v339 = vld [vmem:[%s333 + $0x10] sm:$0xff]
                %340 = vst [vmem:[%s334 + $0x10] sm:$0xff] %v339
                %v341 = vld [vmem:[%s333 + $0x18] sm:$0xff]
                %342 = vst [vmem:[%s334 + $0x18] sm:$0xff] %v341
                %v343 = vld [vmem:[%s333 + $0x20] sm:$0xff]
                %344 = vst [vmem:[%s334 + $0x20] sm:$0xff] %v343
                %v345 = vld [vmem:[%s333 + $0x28] sm:$0xff]
                %346 = vst [vmem:[%s334 + $0x28] sm:$0xff] %v345
                %v347 = vld [vmem:[%s333 + $0x30] sm:$0xff]
                %348 = vst [vmem:[%s334 + $0x30] sm:$0xff] %v347
                %v349 = vld [vmem:[%s333 + $0x38] sm:$0xff]
                %350 = vst [vmem:[%s334 + $0x38] sm:$0xff] %v349
                %s351 = sadd.s32 1, %s332
                %p352 = scmp.ge.s32.totalorder %s351, %s325
                %s353 = scalar_select %p352, 0, %s351
                %s354 = smul.u32 %s353, 64
                %s355 = smul.u32 %s353, 64
                %s356 = scalar_lea.vmem %s305, %s354 [#allocation2]
                %s357 = scalar_lea.vmem %s316, %s355
              $region49: #{biasfree_layernorm.1} parent=43 // loop_footer
                %s329 = sadd.s32 %s327, 1
              $region50: #{biasfree_layernorm.1} parent=43 // loop_footer_branch
                %326 = sbr.rel target = $region46
              $region51: #{biasfree_layernorm.1} parent=43 // loop_exit
                _
              %s358 = sshrl.u32 %s312, 3
              %s359 = sand.u32 %s312, 7
              %s360 = smul.u32 %s358, 8
              %s361 = smul.u32 8, %s360
              %s362 = scalar_lea.vmem %s305, %s361 [#allocation2]
              %s363 = smul.u32 8, %s360
              %s364 = scalar_lea.vmem %s316, %s363
              // While loop
              $region52: #{biasfree_layernorm.1} parent=43 // loop_pre_header
                _
              $region53: #{biasfree_layernorm.1} parent=43 // loop_header
                %s366 = sphi 0, %s368
                %p367 = scmp.ge.s32.totalorder %s366, %s359
                %s371 = sphi 0, %s378
                %s372 = sphi %s362, %s381
                %s373 = sphi %s364, %s382
              $region54: #{biasfree_layernorm.1} parent=43 // loop_header_branch
                %370 = sbr.rel (%p367) target = $region58
              $region55: #{biasfree_layernorm.1} parent=43 // loop_body
                %v374 = vld [vmem:[%s372] sm:$0xff]
                %375 = vst [vmem:[%s373] sm:$0xff] %v374
                %s376 = sadd.s32 1, %s371
                %p377 = scmp.ge.s32.totalorder %s376, %s359
                %s378 = scalar_select %p377, 0, %s376
                %s379 = smul.u32 %s378, 8
                %s380 = smul.u32 %s378, 8
                %s381 = scalar_lea.vmem %s362, %s379 [#allocation2]
                %s382 = scalar_lea.vmem %s364, %s380
              $region56: #{biasfree_layernorm.1} parent=43 // loop_footer
                %s368 = sadd.s32 %s366, 1
              $region57: #{biasfree_layernorm.1} parent=43 // loop_footer_branch
                %365 = sbr.rel target = $region53
              $region58: #{biasfree_layernorm.1} parent=43 // loop_exit
                _
            $region44: #{biasfree_layernorm.1} parent=35 // pred_fallthru
              _
          $region36: #{biasfree_layernorm.1} parent=31 // pred_fallthru
            _
          %445 = vnop
        $region32: #{biasfree_layernorm.1} parent=27 // pred_fallthru
          _
      $region28: #{biasfree_layernorm.1} parent=5 // pred_fallthru
        _
      %p446 = scmp.le.s32.totalorder 2, %s8
      // Predicated region
      $region81: #{biasfree_layernorm.1} parent=5 // pred_check
        %p447 = pneg %p446
      $region82: #{biasfree_layernorm.1} parent=5 // pred_check_branch
        %449 = sbr.rel (%p447) target = $region84
      $region83: #{biasfree_layernorm.1} parent=5 // pred_region
        %s450 = ssub.s32 %s8, 2
        // Predicated region
        $region85: #{biasfree_layernorm.1} parent=83 // pred_check
          %p451 = pneg %p84
        $region86: #{biasfree_layernorm.1} parent=83 // pred_check_branch
          %453 = sbr.rel (%p451) target = $region88
        $region87: #{biasfree_layernorm.1} parent=83 // pred_region
          %s454 = sand.u32 %s69, 1
          %s455 = sand.u32 %s69, 1
          %s456 = smul.addr %s455, 64
          %s457 = scalar_lea.vmem [#allocation2], %s456
        $region88: #{biasfree_layernorm.1} parent=83 // pred_fallthru
          _
      $region84: #{biasfree_layernorm.1} parent=5 // pred_fallthru
        _
    $region6: #{biasfree_layernorm.1} parent=1 // loop_footer
      %s12 = sadd.s32 1, %s8
    $region7: #{biasfree_layernorm.1} parent=1 // loop_footer_branch
      %7 = sbr.rel target = $region3
    $region8: #{biasfree_layernorm.1} parent=1 // loop_exit
      _

</llo_original>
